<compile_context>
chip_gen: v7x
topology: tpu7x:2x2x1
jax: 0.10.0
libtpu: 0.0.40
codegen_flags: <defaults>
</compile_context>

<pallas_src>
import functools

import jax
import jax.numpy as jnp
from jax import lax
from jax.experimental import pallas as pl
from jax.experimental.pallas import tpu as pltpu


def _sparsenet_kernel(img_ref, w_ref, pred_ref, *, r_lr, lmda, maxiter):
    img = img_ref[...]          # (B, D) f32
    w = w_ref[...]              # (D, H) f32 (PyTorch nn.Linear weight layout)
    batch, _ = img.shape
    hidden = w.shape[1]

    # ---- loop-invariant precompute (one-time cost) -------------------------
    step = jnp.float32(2.0 * r_lr / batch)           # lr * dLoss/dpred scale
    # G' = step * W^T W : (H, H); contract input_dim (axis 0) of both operands.
    gram = step * lax.dot_general(
        w, w, (((0,), (0,)), ((), ())), preferred_element_type=jnp.float32)
    # b' = step * img @ W : (B, H)
    proj = step * jnp.dot(img, w, preferred_element_type=jnp.float32)

    thr = jnp.float32(lmda)
    tol_sq = jnp.float32(0.01 * 0.01)

    def soft_threshold(x):
        return jnp.maximum(x - thr, 0.0) - jnp.maximum(-x - thr, 0.0)

    # ---- ISTA loop: grad = step * (r @ (W^T W) - img @ W) ------------------
    def cond_fun(carry):
        i, converged, _ = carry
        return jnp.logical_and(i < maxiter, jnp.logical_not(converged))

    def body_fun(carry):
        i, _, r = carry
        r_new = soft_threshold(
            r - (jnp.dot(r, gram, preferred_element_type=jnp.float32) - proj))
        diff_sq = jnp.sum((r_new - r) ** 2)
        old_sq = jnp.sum(r * r)
        converged = diff_sq < tol_sq * old_sq        # ||dr|| / ||r|| < 0.01
        return i + 1, converged, r_new

    r0 = jnp.zeros((batch, hidden), dtype=jnp.float32)
    _, _, r_final = lax.while_loop(
        cond_fun, body_fun, (jnp.int32(0), jnp.bool_(False), r0))

    # pred = r @ W^T (single transposed contraction, outside the loop).
    pred_ref[...] = lax.dot_general(
        r_final, w, (((1,), (1,)), ((), ())),
        preferred_element_type=jnp.float32).astype(pred_ref.dtype)


def sparsenet_forward(img_batch, weight, *, r_lr=0.1, lmda=0.005, maxiter=500):
    """img_batch: (B, input_dim) f32, weight: (input_dim, hidden_dim) f32."""
    batch, input_dim = img_batch.shape
    hidden_dim = weight.shape[1]

    kernel = functools.partial(
        _sparsenet_kernel, r_lr=r_lr, lmda=lmda, maxiter=maxiter)

    # Advisory cost hint: in-loop matmul is (B,H)x(H,H) per iteration.
    flops = (2 * batch * hidden_dim * hidden_dim * maxiter     # ISTA loop
             + 2 * input_dim * hidden_dim * hidden_dim         # Gram matrix
             + 2 * batch * input_dim * hidden_dim * 2)         # proj + pred
    bytes_accessed = 4 * (batch * input_dim * 2 + input_dim * hidden_dim)

    # TODO(synk): at realistic SparseNet sizes, add a batch-dim grid with
    # dimension_semantics=("parallel",) so v7x's two TensorCores split rows;
    # at B=8 a single grid point is the right choice.
    return pl.pallas_call(
        kernel,
        out_shape=jax.ShapeDtypeStruct((batch, input_dim), jnp.float32),
        in_specs=[
            pl.BlockSpec(memory_space=pltpu.MemorySpace.VMEM),
            pl.BlockSpec(memory_space=pltpu.MemorySpace.VMEM),
        ],
        out_specs=pl.BlockSpec(memory_space=pltpu.MemorySpace.VMEM),
        cost_estimate=pl.CostEstimate(
            flops=flops, transcendentals=0, bytes_accessed=bytes_accessed),
    )(img_batch, weight)


def sparsenet_forward_ref(img_batch, weight, *, r_lr=0.1, lmda=0.005, maxiter=500):
    """Pure-JAX reference with identical semantics (sanity check)."""
    batch = img_batch.shape[0]
    hidden = weight.shape[1]
    hi = lax.Precision.HIGHEST

    step = 2.0 * r_lr / batch
    gram = step * jnp.dot(weight.T, weight, precision=hi)
    proj = step * jnp.dot(img_batch, weight, precision=hi)

    def cond_fun(carry):
        i, converged, _ = carry
        return jnp.logical_and(i < maxiter, jnp.logical_not(converged))

    def body_fun(carry):
        i, _, r = carry
        r_new = r - (jnp.dot(r, gram, precision=hi) - proj)
        r_new = jnp.maximum(r_new - lmda, 0.0) - jnp.maximum(-r_new - lmda, 0.0)
        converged = jnp.sum((r_new - r) ** 2) < (0.01 ** 2) * jnp.sum(r * r)
        return i + 1, converged, r_new

    r0 = jnp.zeros((batch, hidden), dtype=jnp.float32)
    _, _, r_final = lax.while_loop(
        cond_fun, body_fun, (jnp.int32(0), jnp.bool_(False), r0))
    return jnp.dot(r_final, weight.T, precision=hi)


if __name__ == "__main__":
    # Small shapes consistent with the module: img_batch (B, input_dim).
    batch, input_dim, hidden_dim = 8, 64, 32

    key = jax.random.PRNGKey(0)
    k_w, k_x = jax.random.split(key)

    # U = nn.Linear(hidden_dim, input_dim, bias=False) -> weight (input_dim, hidden_dim),
    # then normalize_weights(): unit L2 norm along dim=0 (the input_dim axis).
    w_raw = jax.random.normal(k_w, (input_dim, hidden_dim), dtype=jnp.float32)
    weight = w_raw / jnp.linalg.norm(w_raw, axis=0, keepdims=True)

    img_batch = jax.random.normal(k_x, (batch, input_dim), dtype=jnp.float32)

    pred = jax.block_until_ready(sparsenet_forward(img_batch, weight))

    # sanity check against the pure-JAX reference
    pred_ref = jax.block_until_ready(sparsenet_forward_ref(img_batch, weight))
    assert jnp.allclose(pred, pred_ref, atol=1e-4, rtol=1e-4), "mismatch vs reference"

    print("KERNEL_OK")
</pallas_src>

<mosaic_0001>
module attributes {stable_mosaic.version = 11 : i64} {
  func.func @_sparsenet_kernel(%arg0: memref<8x64xf32, #tpu.memory_space<vmem>>, %arg1: memref<64x32xf32, #tpu.memory_space<vmem>>, %arg2: memref<8x64xf32, #tpu.memory_space<vmem>>) attributes {dimension_semantics = [], scalar_prefetch = 0 : i64, scratch_operands = 0 : i64, tpu.core_type = #tpu.core_type<tc>} {
    %c0 = arith.constant 0 : index
    %c0_0 = arith.constant 0 : index
    %0 = vector.load %arg0[%c0, %c0_0] : memref<8x64xf32, #tpu.memory_space<vmem>>, vector<8x64xf32>
    %c0_1 = arith.constant 0 : index
    %c0_2 = arith.constant 0 : index
    %1 = vector.load %arg1[%c0_1, %c0_2] : memref<64x32xf32, #tpu.memory_space<vmem>>, vector<64x32xf32>
    %cst = arith.constant dense<0.000000e+00> : vector<32x32xf32>
    %2 = tpu.matmul %1, %1, %cst {dimension_numbers = #tpu.dot_dimension_numbers<[0], [0], [1], [1], [0, 1, 1, 1], [], []>} : vector<64x32xf32>, vector<64x32xf32>, vector<32x32xf32> -> vector<32x32xf32>
    %cst_3 = arith.constant 2.500000e-02 : f32
    %3 = vector.broadcast %cst_3 : f32 to vector<32x32xf32>
    %4 = arith.mulf %3, %2 : vector<32x32xf32>
    %cst_4 = arith.constant dense<0.000000e+00> : vector<8x32xf32>
    %5 = tpu.matmul %0, %1, %cst_4 {dimension_numbers = #tpu.dot_dimension_numbers<[1], [0], [0], [1], [0, 0, 1, 1], [], []>} : vector<8x64xf32>, vector<64x32xf32>, vector<8x32xf32> -> vector<8x32xf32>
    %cst_5 = arith.constant 2.500000e-02 : f32
    %6 = vector.broadcast %cst_5 : f32 to vector<8x32xf32>
    %7 = arith.mulf %6, %5 : vector<8x32xf32>
    %cst_6 = arith.constant 0.000000e+00 : f32
    %8 = vector.broadcast %cst_6 : f32 to vector<8x32xf32>
    %cst_7 = arith.constant 5.000000e-03 : f32
    %cst_8 = arith.constant 9.99999974E-5 : f32
    %c0_i32 = arith.constant 0 : i32
    %false = arith.constant false
    %9:3 = scf.while (%arg3 = %c0_i32, %arg4 = %false, %arg5 = %8) : (i32, i1, vector<8x32xf32>) -> (i32, i1, vector<8x32xf32>) {
      %c500_i32 = arith.constant 500 : i32
      %12 = arith.cmpi slt, %arg3, %c500_i32 : i32
      %true = arith.constant true
      %13 = arith.xori %arg4, %true : i1
      %14 = arith.andi %12, %13 : i1
      scf.condition(%14) %arg3, %arg4, %arg5 : i32, i1, vector<8x32xf32>
    } do {
    ^bb0(%arg3: i32, %arg4: i1, %arg5: vector<8x32xf32>):
      %cst_12 = arith.constant dense<0.000000e+00> : vector<8x32xf32>
      %12 = tpu.matmul %arg5, %4, %cst_12 {dimension_numbers = #tpu.dot_dimension_numbers<[1], [0], [0], [1], [0, 0, 1, 1], [], []>} : vector<8x32xf32>, vector<32x32xf32>, vector<8x32xf32> -> vector<8x32xf32>
      %13 = arith.subf %12, %7 : vector<8x32xf32>
      %14 = arith.subf %arg5, %13 : vector<8x32xf32>
      %15 = vector.broadcast %cst_7 : f32 to vector<8x32xf32>
      %16 = arith.subf %14, %15 : vector<8x32xf32>
      %cst_13 = arith.constant 0.000000e+00 : f32
      %17 = vector.broadcast %cst_13 : f32 to vector<8x32xf32>
      %18 = arith.maximumf %16, %17 : vector<8x32xf32>
      %cst_14 = arith.constant 0.000000e+00 : f32
      %19 = vector.broadcast %cst_14 : f32 to vector<8x32xf32>
      %20 = arith.subf %19, %14 : vector<8x32xf32>
      %21 = vector.broadcast %cst_7 : f32 to vector<8x32xf32>
      %22 = arith.subf %20, %21 : vector<8x32xf32>
      %cst_15 = arith.constant 0.000000e+00 : f32
      %23 = vector.broadcast %cst_15 : f32 to vector<8x32xf32>
      %24 = arith.maximumf %22, %23 : vector<8x32xf32>
      %25 = arith.subf %18, %24 : vector<8x32xf32>
      %26 = arith.subf %25, %arg5 : vector<8x32xf32>
      %27 = arith.mulf %26, %26 : vector<8x32xf32>
      %28 = vector.shape_cast %27 : vector<8x32xf32> to vector<1x8x32xf32>
      %cst_16 = arith.constant dense<0.000000e+00> : vector<1xf32>
      %29 = vector.multi_reduction <add>, %28, %cst_16 [1, 2] : vector<1x8x32xf32> to vector<1xf32>
      %30 = vector.shape_cast %29 : vector<1xf32> to vector<1x1x1xf32>
      %31 = vector.extract %30[0, 0, 0] : f32 from vector<1x1x1xf32>
      %32 = arith.mulf %arg5, %arg5 : vector<8x32xf32>
      %33 = vector.shape_cast %32 : vector<8x32xf32> to vector<1x8x32xf32>
      %cst_17 = arith.constant dense<0.000000e+00> : vector<1xf32>
      %34 = vector.multi_reduction <add>, %33, %cst_17 [1, 2] : vector<1x8x32xf32> to vector<1xf32>
      %35 = vector.shape_cast %34 : vector<1xf32> to vector<1x1x1xf32>
      %36 = vector.extract %35[0, 0, 0] : f32 from vector<1x1x1xf32>
      %37 = arith.mulf %cst_8, %36 : f32
      %38 = arith.cmpf olt, %31, %37 : f32
      %c1_i32 = arith.constant 1 : i32
      %39 = arith.addi %arg3, %c1_i32 : i32
      scf.yield %39, %38, %25 : i32, i1, vector<8x32xf32>
    }
    %cst_9 = arith.constant dense<0.000000e+00> : vector<8x64xf32>
    %10 = tpu.matmul %9#2, %1, %cst_9 {dimension_numbers = #tpu.dot_dimension_numbers<[1], [1], [0], [0], [0, 0, 1, 0], [], []>} : vector<8x32xf32>, vector<64x32xf32>, vector<8x64xf32> -> vector<8x64xf32>
    %c0_10 = arith.constant 0 : index
    %c0_11 = arith.constant 0 : index
    %11 = vector.load %arg2[%c0_10, %c0_11] : memref<8x64xf32, #tpu.memory_space<vmem>>, vector<8x64xf32>
    tpu.vector_store %arg2[%c0_10, %c0_11], %10 {strides = array<i32>} : memref<8x64xf32, #tpu.memory_space<vmem>>, vector<8x64xf32>,
    return
  }
}

</mosaic_0001>

<llo_original>
// kernel: tpu_custom_call.1
$region0: #{tpu_custom_call.1}
  #allocation0 [shape = 'u32[]', space=smem, size = 0x4, offset = 0x4, fixed_abs, tag = 'smem constant byte address 0x4 - core index']
  #allocation1 [shape = 'u32[144,128]{1,0:T(1,128)}', space=vmem, size = 0x12000, scoped, tag = 'internal scratch']
  %s0 = inlined_call_operand.vmem [shape: f32[8,64], index: 0, kind: input, shape index: {}]
  %s1 = inlined_call_operand.vmem [shape: f32[64,32], index: 1, kind: input, shape index: {}]
  %s2 = inlined_call_operand.hbm [shape: f32[8,64], index: 2, kind: output, shape index: {}]
  %s3 = sld [smem:[#allocation0]]
  $region25: #{tpu_custom_call.1} parent=0
    _
  %s5 = ssub.s32 1, %s3
  %s6 = scalar_select 0, %s5, %s3
  $region1: #{tpu_custom_call.1} parent=0
    #allocation2 [shape = 'u8[4096]{0}', space=vmem, size = 0x1000, scoped, tag = 'output window, operand 0, single buffered']
    #allocation3 [shape = 's32[1]{0}', space=sflag, size = 0x4, scoped, tag = 'scoped memory for tpu_custom_call.1']
    %7 = vsyncpa [#allocation3], 0
    // Predicated region
    $region2: #{tpu_custom_call.1} parent=1 // pred_check
      _
    $region3: #{tpu_custom_call.1} parent=1 // pred_check_branch
      %9 = sbr.rel (0) target = $region5
    $region4: #{tpu_custom_call.1} parent=1 // pred_region
      _
    $region5: #{tpu_custom_call.1} parent=1 // pred_fallthru
      _
    // Predicated region
    $region6: #{tpu_custom_call.1} parent=1 // pred_check
      _
    $region7: #{tpu_custom_call.1} parent=1 // pred_check_branch
      %11 = sbr.rel (0) target = $region9
    $region8: #{tpu_custom_call.1} parent=1 // pred_region
      _
    $region9: #{tpu_custom_call.1} parent=1 // pred_fallthru
      _
    %v12 = vld [vmem:[%s0] sm:$0xff]
    %v13 = vld [vmem:[%s1] sm:$0xff]
    %v14 = vld [vmem:[%s1 + $0x8] sm:$0xff]
    %v15 = vld [vmem:[%s1 + $0x10] sm:$0xff]
    %v16 = vld [vmem:[%s1 + $0x18] sm:$0xff]
    %v17 = vld [vmem:[%s1 + $0x20] sm:$0xff]
    %v18 = vld [vmem:[%s1 + $0x28] sm:$0xff]
    %v19 = vld [vmem:[%s1 + $0x30] sm:$0xff]
    %v20 = vld [vmem:[%s1 + $0x38] sm:$0xff]
    %21 = vxpose.xlu0.b32.start [1/16] %v13, 128
    %22 = vxpose.xlu0.b32.cont [2/16] %v14, 128
    %23 = vxpose.xlu0.b32.cont [3/16] %v15, 128
    %24 = vxpose.xlu0.b32.cont [4/16] %v16, 128
    %25 = vxpose.xlu0.b32.cont [5/16] %v17, 128
    %26 = vxpose.xlu0.b32.cont [6/16] %v18, 128
    %27 = vxpose.xlu0.b32.cont [7/16] %v19, 128
    %28 = vxpose.xlu0.b32.cont [8/16] %v20, 128
    %29 = vxpose.xlu0.b32.cont [9/16] 0.0, 128
    %30 = vxpose.xlu0.b32.cont [10/16] 0.0, 128
    %31 = vxpose.xlu0.b32.cont [11/16] 0.0, 128
    %32 = vxpose.xlu0.b32.cont [12/16] 0.0, 128
    %33 = vxpose.xlu0.b32.cont [13/16] 0.0, 128
    %34 = vxpose.xlu0.b32.cont [14/16] 0.0, 128
    %35 = vxpose.xlu0.b32.cont [15/16] 0.0, 128
    %36 = vxpose.xlu0.b32.end [16/16] 0.0, 128
    %v37 = vpop.trf.xlu0
    %v38 = vpop.trf.xlu0
    %v39 = vpop.trf.xlu0
    %v40 = vpop.trf.xlu0
    %v41 = vpop.trf.xlu0
    %v42 = vpop.trf.xlu0
    %v43 = vpop.trf.xlu0
    %v44 = vpop.trf.xlu0
    %v45 = vpop.trf.xlu0
    %v46 = vpop.trf.xlu0
    %v47 = vpop.trf.xlu0
    %v48 = vpop.trf.xlu0
    %v49 = vpop.trf.xlu0
    %v50 = vpop.trf.xlu0
    %v51 = vpop.trf.xlu0
    %v52 = vpop.trf.xlu0
    %vm53 = vcmask 523264
    %v55 = vsel %vm53, %v37, 0
    %v58 = vsel %vm53, %v38, 0
    %v61 = vsel %vm53, %v39, 0
    %v64 = vsel %vm53, %v40, 0
    %66 = vmatprep.subr.mxu0 0.0
    %67 = vmatpush1.msra.mxu0 %v13
    %68 = vmatprep.subr.mxu0 0.0
    %69 = vmatpush1.msra.mxu0 %v14
    %70 = vmatprep.subr.mxu0 0.0
    %71 = vmatpush1.msra.mxu0 %v15
    %72 = vmatprep.subr.mxu0 0.0
    %73 = vmatpush1.msra.mxu0 %v16
    %74 = vmatprep.subr.mxu0 0.0
    %75 = vmatpush1.msra.mxu0 %v17
    %76 = vmatprep.subr.mxu0 0.0
    %77 = vmatpush1.msra.mxu0 %v18
    %78 = vmatprep.subr.mxu0 0.0
    %79 = vmatpush1.msra.mxu0 %v19
    %80 = vmatprep.subr.mxu0 0.0
    %81 = vmatpush1.msra.mxu0 %v20
    %82 = vmatprep.subr.mxu0 0.0
    %83 = vmatpush1.msra.mxu0 0.0
    %84 = vmatprep.subr.mxu0 0.0
    %85 = vmatpush1.msra.mxu0 0.0
    %86 = vmatprep.subr.mxu0 0.0
    %87 = vmatpush1.msra.mxu0 0.0
    %88 = vmatprep.subr.mxu0 0.0
    %89 = vmatpush1.msra.mxu0 0.0
    %90 = vmatprep.subr.mxu0 0.0
    %91 = vmatpush1.msra.mxu0 0.0
    %92 = vmatprep.subr.mxu0 0.0
    %93 = vmatpush1.msra.mxu0 0.0
    %94 = vmatprep.subr.mxu0 0.0
    %95 = vmatpush1.msra.mxu0 0.0
    %96 = vmatprep.subr.mxu0 0.0
    %97 = vmatpush1.msra.mxu0 0.0
    %98 = vmatprep.subr.mxu0 0.0
    %99 = vmatpush1.msra.mxu0 0.0
    %100 = vmatprep.subr.mxu0 0.0
    %101 = vmatpush1.msra.mxu0 0.0
    %102 = vmatprep.subr.mxu0 0.0
    %103 = vmatpush1.msra.mxu0 0.0
    %104 = vmatprep.subr.mxu0 0.0
    %105 = vmatpush1.msra.mxu0 0.0
    %106 = vmatprep.subr.mxu0 0.0
    %107 = vmatpush1.msra.mxu0 0.0
    %108 = vmatprep.subr.mxu0 0.0
    %109 = vmatpush1.msra.mxu0 0.0
    %110 = vmatprep.subr.mxu0 0.0
    %111 = vmatpush1.msra.mxu0 0.0
    %112 = vmatprep.subr.mxu0 0.0
    %113 = vmatpush1.msra.mxu0 0.0
    %114 = vmatprep.subr.mxu0 0.0
    %115 = vmatpush1.msra.mxu0 0.0
    %116 = vmatprep.subr.mxu0 0.0
    %117 = vmatpush1.msra.mxu0 0.0
    %118 = vmatprep.subr.mxu0 0.0
    %119 = vmatpush1.msra.mxu0 0.0
    %120 = vmatprep.subr.mxu0 0.0
    %121 = vmatpush1.msra.mxu0 0.0
    %122 = vmatprep.subr.mxu0 0.0
    %123 = vmatpush1.msra.mxu0 0.0
    %124 = vmatprep.subr.mxu0 0.0
    %125 = vmatpush1.msra.mxu0 0.0
    %126 = vmatprep.subr.mxu0 0.0
    %127 = vmatpush1.msra.mxu0 0.0
    %128 = vmatprep.subr.mxu0 0.0
    %129 = vmatpush1.msra.mxu0 0.0
    %130 = vmatprep.mubr.f32.mxu0 0.0
    %131 = vmatmul.mubr.f32.gmra.mrb[0].mxu0 %v55
    %v132 = vpop.f32.mrb[0].mxu0
    %v133 = vadd.f32 0.0, %v132
    %v134 = vpop.f32.mrb[0].mxu0
    %135 = vmatprep.mubr.f32.mxu0 0.0
    %136 = vmatmul.mubr.f32.gmra.mrb[0].mxu0 %v58
    %v137 = vpop.f32.mrb[0].mxu0
    %v138 = vadd.f32 0.0, %v137
    %v139 = vpop.f32.mrb[0].mxu0
    %140 = vmatprep.mubr.f32.mxu0 0.0
    %141 = vmatmul.mubr.f32.gmra.mrb[0].mxu0 %v61
    %v142 = vpop.f32.mrb[0].mxu0
    %v143 = vadd.f32 0.0, %v142
    %v144 = vpop.f32.mrb[0].mxu0
    %145 = vmatprep.mubr.f32.mxu0 0.0
    %146 = vmatmul.mubr.f32.gmra.mrb[0].mxu0 %v64
    %v147 = vpop.f32.mrb[0].mxu0
    %v148 = vadd.f32 0.0, %v147
    %v149 = vpop.f32.mrb[0].mxu0
    %150 = vdwg.mxu0
    %v151 = vmul.f32 %v133, 0.025
    %v152 = vmul.f32 %v138, 0.025
    %v153 = vmul.f32 %v143, 0.025
    %v154 = vmul.f32 %v148, 0.025
    %v156 = vsel %vm53, %v12, 0
    %158 = vmatprep.subr.mxu0 0.0
    %159 = vmatpush1.msra.mxu0 %v13
    %160 = vmatprep.subr.mxu0 0.0
    %161 = vmatpush1.msra.mxu0 %v14
    %162 = vmatprep.subr.mxu0 0.0
    %163 = vmatpush1.msra.mxu0 %v15
    %164 = vmatprep.subr.mxu0 0.0
    %165 = vmatpush1.msra.mxu0 %v16
    %166 = vmatprep.subr.mxu0 0.0
    %167 = vmatpush1.msra.mxu0 %v17
    %168 = vmatprep.subr.mxu0 0.0
    %169 = vmatpush1.msra.mxu0 %v18
    %170 = vmatprep.subr.mxu0 0.0
    %171 = vmatpush1.msra.mxu0 %v19
    %172 = vmatprep.subr.mxu0 0.0
    %173 = vmatpush1.msra.mxu0 %v20
    %174 = vmatprep.subr.mxu0 0.0
    %175 = vmatpush1.msra.mxu0 0.0
    %176 = vmatprep.subr.mxu0 0.0
    %177 = vmatpush1.msra.mxu0 0.0
    %178 = vmatprep.subr.mxu0 0.0
    %179 = vmatpush1.msra.mxu0 0.0
    %180 = vmatprep.subr.mxu0 0.0
    %181 = vmatpush1.msra.mxu0 0.0
    %182 = vmatprep.subr.mxu0 0.0
    %183 = vmatpush1.msra.mxu0 0.0
    %184 = vmatprep.subr.mxu0 0.0
    %185 = vmatpush1.msra.mxu0 0.0
    %186 = vmatprep.subr.mxu0 0.0
    %187 = vmatpush1.msra.mxu0 0.0
    %188 = vmatprep.subr.mxu0 0.0
    %189 = vmatpush1.msra.mxu0 0.0
    %190 = vmatprep.subr.mxu0 0.0
    %191 = vmatpush1.msra.mxu0 0.0
    %192 = vmatprep.subr.mxu0 0.0
    %193 = vmatpush1.msra.mxu0 0.0
    %194 = vmatprep.subr.mxu0 0.0
    %195 = vmatpush1.msra.mxu0 0.0
    %196 = vmatprep.subr.mxu0 0.0
    %197 = vmatpush1.msra.mxu0 0.0
    %198 = vmatprep.subr.mxu0 0.0
    %199 = vmatpush1.msra.mxu0 0.0
    %200 = vmatprep.subr.mxu0 0.0
    %201 = vmatpush1.msra.mxu0 0.0
    %202 = vmatprep.subr.mxu0 0.0
    %203 = vmatpush1.msra.mxu0 0.0
    %204 = vmatprep.subr.mxu0 0.0
    %205 = vmatpush1.msra.mxu0 0.0
    %206 = vmatprep.subr.mxu0 0.0
    %207 = vmatpush1.msra.mxu0 0.0
    %208 = vmatprep.subr.mxu0 0.0
    %209 = vmatpush1.msra.mxu0 0.0
    %210 = vmatprep.subr.mxu0 0.0
    %211 = vmatpush1.msra.mxu0 0.0
    %212 = vmatprep.subr.mxu0 0.0
    %213 = vmatpush1.msra.mxu0 0.0
    %214 = vmatprep.subr.mxu0 0.0
    %215 = vmatpush1.msra.mxu0 0.0
    %216 = vmatprep.subr.mxu0 0.0
    %217 = vmatpush1.msra.mxu0 0.0
    %218 = vmatprep.subr.mxu0 0.0
    %219 = vmatpush1.msra.mxu0 0.0
    %220 = vmatprep.subr.mxu0 0.0
    %221 = vmatpush1.msra.mxu0 0.0
    %222 = vmatprep.mubr.f32.mxu0 0.0
    %223 = vmatmul.mubr.f32.gmra.mrb[0].mxu0 %v156
    %v224 = vpop.f32.mrb[0].mxu0
    %v225 = vadd.f32 0.0, %v224
    %v226 = vpop.f32.mrb[0].mxu0
    %227 = vdwg.mxu0
    %v228 = vmul.f32 %v225, 0.025
    // While loop
    $region10: #{tpu_custom_call.1} parent=1 // loop_pre_header
      _
    $region11: #{tpu_custom_call.1} parent=1 // loop_header
      %s230 = sphi 0, %s346
      %p231 = pphi 0, %p345
      %v232 = vphi 0.0, %v320
      %p233 = scmp.lt.s32.totalorder %s230, 500
      %p234 = pneg %p231
      %p235 = pnand %p233, %p234
      %p236 = pneg %p235
    $region12: #{tpu_custom_call.1} parent=1 // loop_header_branch
      %238 = sbr.rel (%p235) target = $region16
    $region13: #{tpu_custom_call.1} parent=1 // loop_body
      %vm239 = vcmask 261120
      %v241 = vsel %vm239, %v232, 0
      %243 = vmatprep.subr.mxu0 0.0
      %244 = vmatpush1.msra.mxu0 %v151
      %245 = vmatprep.subr.mxu0 0.0
      %246 = vmatpush1.msra.mxu0 %v152
      %247 = vmatprep.subr.mxu0 0.0
      %248 = vmatpush1.msra.mxu0 %v153
      %249 = vmatprep.subr.mxu0 0.0
      %250 = vmatpush1.msra.mxu0 %v154
      %251 = vmatprep.subr.mxu0 0.0
      %252 = vmatpush1.msra.mxu0 0.0
      %253 = vmatprep.subr.mxu0 0.0
      %254 = vmatpush1.msra.mxu0 0.0
      %255 = vmatprep.subr.mxu0 0.0
      %256 = vmatpush1.msra.mxu0 0.0
      %257 = vmatprep.subr.mxu0 0.0
      %258 = vmatpush1.msra.mxu0 0.0
      %259 = vmatprep.subr.mxu0 0.0
      %260 = vmatpush1.msra.mxu0 0.0
      %261 = vmatprep.subr.mxu0 0.0
      %262 = vmatpush1.msra.mxu0 0.0
      %263 = vmatprep.subr.mxu0 0.0
      %264 = vmatpush1.msra.mxu0 0.0
      %265 = vmatprep.subr.mxu0 0.0
      %266 = vmatpush1.msra.mxu0 0.0
      %267 = vmatprep.subr.mxu0 0.0
      %268 = vmatpush1.msra.mxu0 0.0
      %269 = vmatprep.subr.mxu0 0.0
      %270 = vmatpush1.msra.mxu0 0.0
      %271 = vmatprep.subr.mxu0 0.0
      %272 = vmatpush1.msra.mxu0 0.0
      %273 = vmatprep.subr.mxu0 0.0
      %274 = vmatpush1.msra.mxu0 0.0
      %275 = vmatprep.subr.mxu0 0.0
      %276 = vmatpush1.msra.mxu0 0.0
      %277 = vmatprep.subr.mxu0 0.0
      %278 = vmatpush1.msra.mxu0 0.0
      %279 = vmatprep.subr.mxu0 0.0
      %280 = vmatpush1.msra.mxu0 0.0
      %281 = vmatprep.subr.mxu0 0.0
      %282 = vmatpush1.msra.mxu0 0.0
      %283 = vmatprep.subr.mxu0 0.0
      %284 = vmatpush1.msra.mxu0 0.0
      %285 = vmatprep.subr.mxu0 0.0
      %286 = vmatpush1.msra.mxu0 0.0
      %287 = vmatprep.subr.mxu0 0.0
      %288 = vmatpush1.msra.mxu0 0.0
      %289 = vmatprep.subr.mxu0 0.0
      %290 = vmatpush1.msra.mxu0 0.0
      %291 = vmatprep.subr.mxu0 0.0
      %292 = vmatpush1.msra.mxu0 0.0
      %293 = vmatprep.subr.mxu0 0.0
      %294 = vmatpush1.msra.mxu0 0.0
      %295 = vmatprep.subr.mxu0 0.0
      %296 = vmatpush1.msra.mxu0 0.0
      %297 = vmatprep.subr.mxu0 0.0
      %298 = vmatpush1.msra.mxu0 0.0
      %299 = vmatprep.subr.mxu0 0.0
      %300 = vmatpush1.msra.mxu0 0.0
      %301 = vmatprep.subr.mxu0 0.0
      %302 = vmatpush1.msra.mxu0 0.0
      %303 = vmatprep.subr.mxu0 0.0
      %304 = vmatpush1.msra.mxu0 0.0
      %305 = vmatprep.subr.mxu0 0.0
      %306 = vmatpush1.msra.mxu0 0.0
      %307 = vmatprep.mubr.f32.mxu0 0.0
      %308 = vmatmul.mubr.f32.gmra.mrb[0].mxu0 %v241
      %v309 = vpop.f32.mrb[0].mxu0
      %v310 = vadd.f32 0.0, %v309
      %v311 = vpop.f32.mrb[0].mxu0
      %312 = vdwg.mxu0
      %v313 = vsub.f32 %v310, %v228
      %v314 = vsub.f32 %v232, %v313
      %v315 = vsub.f32 %v314, 0.005
      %v316 = vmax.f32 %v315, 0.0
      %v317 = vsub.f32 0.0, %v314
      %v318 = vsub.f32 %v317, 0.005
      %v319 = vmax.f32 %v318, 0.0
      %v320 = vsub.f32 %v316, %v319
      %v321 = vsub.f32 %v320, %v232
      %v322 = vmul.f32 %v321, %v321
      %v323 = vsel %vm239, %v322, 0.0
      %324 = vadd.xlane.f32.xlu0 %v323
      %v325 = vpop.xlane.xlu0 %324
      %v326 = vrot.slane %v325, 4
      %v327 = vadd.f32 %v325, %v326
      %v328 = vrot.slane %v327, 2
      %v329 = vadd.f32 %v327, %v328
      %v330 = vrot.slane %v329, 1
      %v331 = vadd.f32 %v329, %v330
      %s332 = vtos %v331
      %v333 = vmul.f32 %v232, %v232
      %v334 = vsel %vm239, %v333, 0.0
      %335 = vadd.xlane.f32.xlu0 %v334
      %v336 = vpop.xlane.xlu0 %335
      %v337 = vrot.slane %v336, 4
      %v338 = vadd.f32 %v336, %v337
      %v339 = vrot.slane %v338, 2
      %v340 = vadd.f32 %v338, %v339
      %v341 = vrot.slane %v340, 1
      %v342 = vadd.f32 %v340, %v341
      %s343 = vtos %v342
      %s344 = smul.f32 %s343, 0.0001
      %p345 = scmp.lt.f32.partialorder %s332, %s344
      %s346 = sadd.s32 %s230, 1
    $region14: #{tpu_custom_call.1} parent=1 // loop_footer
      _
    $region15: #{tpu_custom_call.1} parent=1 // loop_footer_branch
      %229 = sbr.rel target = $region11
    $region16: #{tpu_custom_call.1} parent=1 // loop_exit
      _
    %vm347 = vcmask 261120
    %v349 = vsel %vm347, %v232, 0
    %v352 = vsel %vm347, %v13, 0
    %v355 = vsel %vm347, %v14, 0
    %v358 = vsel %vm347, %v15, 0
    %v361 = vsel %vm347, %v16, 0
    %v364 = vsel %vm347, %v17, 0
    %v367 = vsel %vm347, %v18, 0
    %v370 = vsel %vm347, %v19, 0
    %v373 = vsel %vm347, %v20, 0
    %375 = vmatprep.subr.mxu0 0.0
    %376 = vmatpush1.xpose.msra.mxu0 %v352
    %377 = vmatprep.subr.mxu0 0.0
    %378 = vmatpush1.xpose.msra.mxu0 %v355
    %379 = vmatprep.subr.mxu0 0.0
    %380 = vmatpush1.xpose.msra.mxu0 %v358
    %381 = vmatprep.subr.mxu0 0.0
    %382 = vmatpush1.xpose.msra.mxu0 %v361
    %383 = vmatprep.subr.mxu0 0.0
    %384 = vmatpush1.xpose.msra.mxu0 %v364
    %385 = vmatprep.subr.mxu0 0.0
    %386 = vmatpush1.xpose.msra.mxu0 %v367
    %387 = vmatprep.subr.mxu0 0.0
    %388 = vmatpush1.xpose.msra.mxu0 %v370
    %389 = vmatprep.subr.mxu0 0.0
    %390 = vmatpush1.xpose.msra.mxu0 %v373
    %391 = vmatprep.subr.mxu0 0.0
    %392 = vmatpush1.xpose.msra.mxu0 0.0
    %393 = vmatprep.subr.mxu0 0.0
    %394 = vmatpush1.xpose.msra.mxu0 0.0
    %395 = vmatprep.subr.mxu0 0.0
    %396 = vmatpush1.xpose.msra.mxu0 0.0
    %397 = vmatprep.subr.mxu0 0.0
    %398 = vmatpush1.xpose.msra.mxu0 0.0
    %399 = vmatprep.subr.mxu0 0.0
    %400 = vmatpush1.xpose.msra.mxu0 0.0
    %401 = vmatprep.subr.mxu0 0.0
    %402 = vmatpush1.xpose.msra.mxu0 0.0
    %403 = vmatprep.subr.mxu0 0.0
    %404 = vmatpush1.xpose.msra.mxu0 0.0
    %405 = vmatprep.subr.mxu0 0.0
    %406 = vmatpush1.xpose.msra.mxu0 0.0
    %407 = vmatprep.subr.mxu0 0.0
    %408 = vmatpush1.xpose.msra.mxu0 0.0
    %409 = vmatprep.subr.mxu0 0.0
    %410 = vmatpush1.xpose.msra.mxu0 0.0
    %411 = vmatprep.subr.mxu0 0.0
    %412 = vmatpush1.xpose.msra.mxu0 0.0
    %413 = vmatprep.subr.mxu0 0.0
    %414 = vmatpush1.xpose.msra.mxu0 0.0
    %415 = vmatprep.subr.mxu0 0.0
    %416 = vmatpush1.xpose.msra.mxu0 0.0
    %417 = vmatprep.subr.mxu0 0.0
    %418 = vmatpush1.xpose.msra.mxu0 0.0
    %419 = vmatprep.subr.mxu0 0.0
    %420 = vmatpush1.xpose.msra.mxu0 0.0
    %421 = vmatprep.subr.mxu0 0.0
    %422 = vmatpush1.xpose.msra.mxu0 0.0
    %423 = vmatprep.subr.mxu0 0.0
    %424 = vmatpush1.xpose.msra.mxu0 0.0
    %425 = vmatprep.subr.mxu0 0.0
    %426 = vmatpush1.xpose.msra.mxu0 0.0
    %427 = vmatprep.subr.mxu0 0.0
    %428 = vmatpush1.xpose.msra.mxu0 0.0
    %429 = vmatprep.subr.mxu0 0.0
    %430 = vmatpush1.xpose.msra.mxu0 0.0
    %431 = vmatprep.subr.mxu0 0.0
    %432 = vmatpush1.xpose.msra.mxu0 0.0
    %433 = vmatprep.subr.mxu0 0.0
    %434 = vmatpush1.xpose.msra.mxu0 0.0
    %435 = vmatprep.subr.mxu0 0.0
    %436 = vmatpush1.xpose.msra.mxu0 0.0
    %437 = vmatprep.subr.mxu0 0.0
    %438 = vmatpush1.xpose.msra.mxu0 0.0
    %439 = vmatprep.mubr.f32.mxu0 0.0
    %440 = vmatmul.mubr.f32.gmra.mrb[0].mxu0 %v349
    %v441 = vpop.f32.mrb[0].mxu0
    %v442 = vadd.f32 0.0, %v441
    %v443 = vpop.f32.mrb[0].mxu0
    %444 = vdwg.mxu0
    %445 = vst.msk [vmem:[#allocation2] sm:$0xff] %vm53, %v442
    // Predicated region
    $region17: #{tpu_custom_call.1} parent=1 // pred_check
      _
    $region18: #{tpu_custom_call.1} parent=1 // pred_check_branch
      %447 = sbr.rel (0) target = $region20
    $region19: #{tpu_custom_call.1} parent=1 // pred_region
      %s449 = ssub.s32 128, 128
      %450 = vsyncadd [#allocation3], %s449
      %s452 = sshll.u32 [#allocation2], 4
      %s453 = int_to_ptr.vmem [resolvable:$true] %s452
      %455 = dma.vmem_to_hbm [thread:$0]  %s453, 128, %s2, [#allocation3]
    $region20: #{tpu_custom_call.1} parent=1 // pred_fallthru
      _
    // Predicated region
    $region21: #{tpu_custom_call.1} parent=1 // pred_check
      _
    $region22: #{tpu_custom_call.1} parent=1 // pred_check_branch
      %457 = sbr.rel (0) target = $region24
    $region23: #{tpu_custom_call.1} parent=1 // pred_region
      %458 = dma.done [#allocation3], 128
    $region24: #{tpu_custom_call.1} parent=1 // pred_fallthru
      _
    %459 = vsyncpa [#allocation3], 1

</llo_original>
